<compile_context>
chip_gen: v7x
topology: tpu7x:2x2x1
jax: 0.10.0
libtpu: 0.0.40
codegen_flags: <defaults>
</compile_context>

<pallas_src>
import functools

import jax
import jax.numpy as jnp
from jax.experimental import pallas as pl
from jax.experimental.pallas import tpu as pltpu

HIDDEN = 768          # pooler_output dim fixed by regression_head = nn.Linear(768, C)
NUM_CLASSES = 4
LANE = 128            # class dim padded to one full lane tile
NEG_INF = -1e30       # finite "minus infinity" for logits padding
BATCH = 8
IMG_C, IMG_H, IMG_W = 3, 16, 16


def _head_kernel(uni_ref, multi_ref, feat_ref, w_ref, b_ref,
                 pred_ref, sse_ref, *, num_classes):
    """One batch tile: ratio (log-softmax diff), regression pred, masked partial SSE."""

    def _log_softmax(x):
        # Padded columns hold -1e30: they never win the max and exp() underflows to 0,
        # so they drop out of the logsumexp.
        m = jnp.max(x, axis=1, keepdims=True)
        e = jnp.exp(x - m)
        return x - (m + jnp.log(jnp.sum(e, axis=1, keepdims=True)))

    ratio = _log_softmax(multi_ref[...]) - _log_softmax(uni_ref[...])   # [TB, 128] f32

    # Regression head: bf16 operands, f32 accumulation on the MXU.
    pred = jnp.dot(feat_ref[...], w_ref[...],
                   preferred_element_type=jnp.float32) + b_ref[...]     # [TB, 128] f32
    pred_ref[...] = pred                                                # lane-dense store

    # Masked SSE over the real classes only (padded lanes contribute nothing).
    col = jax.lax.broadcasted_iota(jnp.int32, ratio.shape, 1)
    diff = ratio - pred
    sq = jnp.where(col < num_classes, diff * diff, 0.0)
    sse_ref[...] = jnp.sum(sq, keepdims=True)                           # (1, 1) partial


def _pick_batch_tile(b, cap=2048):
    """Largest multiple-of-8 divisor of b that is <= cap (block == full batch otherwise).

    cap=2048 keeps a double-buffered bf16 feature tile + f32 logits/pred tiles well
    under v7x's 64 MiB VMEM."""
    if b <= cap or b % 8:
        return b
    t = cap - cap % 8
    while b % t:
        t -= 8
    return t


@jax.jit
def transformer_approx_head(uni_logits, multi_logits, pooler_out, w_t, bias):
    """uni/multi_logits: [B, C]; pooler_out: [B, 768]; w_t: [768, C]; bias: [C] or [1, C]."""
    B, C = uni_logits.shape
    assert C <= LANE and w_t.shape == (HIDDEN, C)

    pad = LANE - C
    # Lane-dense padding (host side): -1e30 for logits, zeros for weight/bias.
    uni_p = jnp.pad(uni_logits.astype(jnp.float32), ((0, 0), (0, pad)),
                    constant_values=NEG_INF)
    multi_p = jnp.pad(multi_logits.astype(jnp.float32), ((0, 0), (0, pad)),
                      constant_values=NEG_INF)
    w_p = jnp.pad(w_t.astype(jnp.float32), ((0, 0), (0, pad))).astype(jnp.bfloat16)
    b_p = jnp.pad(bias.astype(jnp.float32).reshape(1, -1), ((0, 0), (0, pad)))
    feat = pooler_out.astype(jnp.bfloat16)

    tile_b = _pick_batch_tile(B)
    nb = B // tile_b

    kernel = functools.partial(_head_kernel, num_classes=C)
    pred_p, sse = pl.pallas_call(
        kernel,
        out_shape=(jax.ShapeDtypeStruct((B, LANE), jnp.float32),
                   jax.ShapeDtypeStruct((nb, 1), jnp.float32)),
        grid_spec=pltpu.PrefetchScalarGridSpec(
            num_scalar_prefetch=0,
            grid=(nb,),
            in_specs=[
                pl.BlockSpec((tile_b, LANE), lambda i: (i, 0)),     # uni logits
                pl.BlockSpec((tile_b, LANE), lambda i: (i, 0)),     # multi logits
                pl.BlockSpec((tile_b, HIDDEN), lambda i: (i, 0)),   # pooler features (bf16)
                pl.BlockSpec((HIDDEN, LANE), lambda i: (0, 0)),     # W^T (bf16), resident
                pl.BlockSpec((1, LANE), lambda i: (0, 0)),          # bias, resident
            ],
            out_specs=(
                pl.BlockSpec((tile_b, LANE), lambda i: (i, 0)),     # pred (lane-dense)
                pl.BlockSpec((1, 1), lambda i: (i, 0)),             # per-block partial SSE
            ),
        ),
        compiler_params=pltpu.CompilerParams(
            dimension_semantics=("parallel",)),
    )(uni_p, multi_p, feat, w_p, b_p)

    # Finish the mean in JAX (constant divide folded into one scalar op).
    mse = jnp.sum(sse) / (B * C)
    return mse, pred_p[:, :C]


def standin_frozen_nets(pixel_values, key):
    """Deterministic plain-JAX stand-ins for the frozen MTL_net / approx_net.

    Produces (unimodal_logits, multimodal_logits, pooler_output) with the same
    shapes the real (checkpoint-loaded) networks would emit."""
    B = pixel_values.shape[0]
    flat = pixel_values.reshape(B, -1).astype(jnp.float32)
    k1, k2, k3 = jax.random.split(key, 3)
    w_uni = 0.02 * jax.random.normal(k1, (flat.shape[1], NUM_CLASSES), jnp.float32)
    w_mul = 0.02 * jax.random.normal(k2, (flat.shape[1], NUM_CLASSES), jnp.float32)
    w_pool = 0.02 * jax.random.normal(k3, (flat.shape[1], HIDDEN), jnp.float32)
    return flat @ w_uni, flat @ w_mul, jnp.tanh(flat @ w_pool)


def reference_forward(uni_logits, multi_logits, pooler_out, w_t, bias):
    """Pure-f32 reference matching the torch module's math."""
    ratio = jnp.log(jax.nn.softmax(multi_logits, axis=1)
                    / jax.nn.softmax(uni_logits, axis=1))
    pred = pooler_out @ w_t + bias
    return jnp.mean((ratio - pred) ** 2), pred


if __name__ == "__main__":
    key = jax.random.PRNGKey(0)
    k_img, k_nets, k_w, k_b = jax.random.split(key, 4)

    # image_inputs: torch-style NCHW pixel values (only consumed by the stand-in nets)
    pixel_values = jax.random.normal(k_img, (BATCH, IMG_C, IMG_H, IMG_W), jnp.float32)

    uni_logits, multi_logits, pooler_out = standin_frozen_nets(pixel_values, k_nets)

    # regression_head = nn.Linear(768, num_classes): weight [C, 768], bias [C]
    w = 0.02 * jax.random.normal(k_w, (NUM_CLASSES, HIDDEN), jnp.float32)
    b = 0.02 * jax.random.normal(k_b, (NUM_CLASSES,), jnp.float32)
    w_t = jnp.transpose(w)              # [768, C] for the kernel's x @ W^T
    bias = b.reshape(1, NUM_CLASSES)    # [1, C] broadcastable

    mse, pred = transformer_approx_head(uni_logits, multi_logits, pooler_out, w_t, bias)
    jax.block_until_ready((mse, pred))

    mse_ref, pred_ref = reference_forward(uni_logits, multi_logits, pooler_out, w_t, bias)
    # bf16 matmul operands in the kernel -> compare to the pure-f32 reference at bf16 accuracy.
    assert jnp.allclose(pred, pred_ref, atol=1e-2, rtol=1e-2), "pred mismatch"
    assert jnp.allclose(mse, mse_ref, atol=1e-2, rtol=1e-2), "mse mismatch"

    print("KERNEL_OK")
</pallas_src>

<mosaic_0001>
module attributes {stable_mosaic.version = 11 : i64} {
  func.func @_head_kernel(%arg0: i32, %arg1: memref<8x128xf32, #tpu.memory_space<vmem>>, %arg2: memref<8x128xf32, #tpu.memory_space<vmem>>, %arg3: memref<8x768xbf16, #tpu.memory_space<vmem>>, %arg4: memref<768x128xbf16, #tpu.memory_space<vmem>>, %arg5: memref<1x128xf32, #tpu.memory_space<vmem>>, %arg6: memref<8x128xf32, #tpu.memory_space<vmem>>, %arg7: memref<1x1xf32, #tpu.memory_space<vmem>>) attributes {dimension_semantics = [#tpu.dimension_semantics<parallel>], iteration_bounds = array<i64: 1>, scalar_prefetch = 0 : i64, scratch_operands = 0 : i64, tpu.core_type = #tpu.core_type<tc>, window_params = [{transform_indices = @transform_0, window_bounds = array<i64: 8, 128>}, {transform_indices = @transform_1, window_bounds = array<i64: 8, 128>}, {transform_indices = @transform_2, window_bounds = array<i64: 8, 768>}, {pipeline_mode = #tpu.pipeline_mode<synchronous>, transform_indices = @transform_3, window_bounds = array<i64: 768, 128>}, {pipeline_mode = #tpu.pipeline_mode<synchronous>, transform_indices = @transform_4, window_bounds = array<i64: 1, 128>}, {transform_indices = @transform_5, window_bounds = array<i64: 8, 128>}, {transform_indices = @transform_6, window_bounds = array<i64: 1, 1>}]} {
    %c0 = arith.constant 0 : index
    %c0_0 = arith.constant 0 : index
    %0 = vector.load %arg2[%c0, %c0_0] : memref<8x128xf32, #tpu.memory_space<vmem>>, vector<8x128xf32>
    %cst = arith.constant dense<0xFF800000> : vector<8xf32>
    %1 = vector.multi_reduction <maximumf>, %0, %cst [1] : vector<8x128xf32> to vector<8xf32>
    %2 = vector.shape_cast %1 : vector<8xf32> to vector<8x1xf32>
    %3 = vector.broadcast %2 : vector<8x1xf32> to vector<8x128xf32>
    %4 = arith.subf %0, %3 : vector<8x128xf32>
    %5 = math.exp %4 : vector<8x128xf32>
    %cst_1 = arith.constant dense<0.000000e+00> : vector<8xf32>
    %6 = vector.multi_reduction <add>, %5, %cst_1 [1] : vector<8x128xf32> to vector<8xf32>
    %7 = vector.shape_cast %6 : vector<8xf32> to vector<8x1xf32>
    %8 = math.log %7 : vector<8x1xf32>
    %9 = arith.addf %2, %8 : vector<8x1xf32>
    %10 = vector.broadcast %9 : vector<8x1xf32> to vector<8x128xf32>
    %11 = arith.subf %0, %10 : vector<8x128xf32>
    %c0_2 = arith.constant 0 : index
    %c0_3 = arith.constant 0 : index
    %12 = vector.load %arg1[%c0_2, %c0_3] : memref<8x128xf32, #tpu.memory_space<vmem>>, vector<8x128xf32>
    %cst_4 = arith.constant dense<0xFF800000> : vector<8xf32>
    %13 = vector.multi_reduction <maximumf>, %12, %cst_4 [1] : vector<8x128xf32> to vector<8xf32>
    %14 = vector.shape_cast %13 : vector<8xf32> to vector<8x1xf32>
    %15 = vector.broadcast %14 : vector<8x1xf32> to vector<8x128xf32>
    %16 = arith.subf %12, %15 : vector<8x128xf32>
    %17 = math.exp %16 : vector<8x128xf32>
    %cst_5 = arith.constant dense<0.000000e+00> : vector<8xf32>
    %18 = vector.multi_reduction <add>, %17, %cst_5 [1] : vector<8x128xf32> to vector<8xf32>
    %19 = vector.shape_cast %18 : vector<8xf32> to vector<8x1xf32>
    %20 = math.log %19 : vector<8x1xf32>
    %21 = arith.addf %14, %20 : vector<8x1xf32>
    %22 = vector.broadcast %21 : vector<8x1xf32> to vector<8x128xf32>
    %23 = arith.subf %12, %22 : vector<8x128xf32>
    %24 = arith.subf %11, %23 : vector<8x128xf32>
    %c0_6 = arith.constant 0 : index
    %c0_7 = arith.constant 0 : index
    %25 = vector.load %arg3[%c0_6, %c0_7] : memref<8x768xbf16, #tpu.memory_space<vmem>>, vector<8x768xbf16>
    %c0_8 = arith.constant 0 : index
    %c0_9 = arith.constant 0 : index
    %26 = vector.load %arg4[%c0_8, %c0_9] : memref<768x128xbf16, #tpu.memory_space<vmem>>, vector<768x128xbf16>
    %cst_10 = arith.constant dense<0.000000e+00> : vector<8x128xf32>
    %27 = tpu.matmul %25, %26, %cst_10 {dimension_numbers = #tpu.dot_dimension_numbers<[1], [0], [0], [1], [0, 0, 1, 1], [], []>} : vector<8x768xbf16>, vector<768x128xbf16>, vector<8x128xf32> -> vector<8x128xf32>
    %c0_11 = arith.constant 0 : index
    %c0_12 = arith.constant 0 : index
    %28 = vector.load %arg5[%c0_11, %c0_12] : memref<1x128xf32, #tpu.memory_space<vmem>>, vector<1x128xf32>
    %29 = vector.broadcast %28 : vector<1x128xf32> to vector<8x128xf32>
    %30 = arith.addf %27, %29 : vector<8x128xf32>
    %c0_13 = arith.constant 0 : index
    %c0_14 = arith.constant 0 : index
    %31 = vector.load %arg6[%c0_13, %c0_14] : memref<8x128xf32, #tpu.memory_space<vmem>>, vector<8x128xf32>
    tpu.vector_store %arg6[%c0_13, %c0_14], %30 {strides = array<i32>} : memref<8x128xf32, #tpu.memory_space<vmem>>, vector<8x128xf32>,
    %32 = tpu.iota {dimensions = array<i32: 1>} : vector<8x128xi32>
    %33 = arith.subf %24, %30 : vector<8x128xf32>
    %c4_i32 = arith.constant 4 : i32
    %34 = vector.broadcast %c4_i32 : i32 to vector<8x128xi32>
    %35 = arith.cmpi slt, %32, %34 : vector<8x128xi32>
    %36 = arith.mulf %33, %33 : vector<8x128xf32>
    %cst_15 = arith.constant 0.000000e+00 : f32
    %37 = vector.broadcast %cst_15 : f32 to vector<8x128xf32>
    %38 = arith.select %35, %36, %37 : vector<8x128xi1>, vector<8x128xf32>
    %39 = vector.shape_cast %38 : vector<8x128xf32> to vector<1x8x128xf32>
    %cst_16 = arith.constant dense<0.000000e+00> : vector<1xf32>
    %40 = vector.multi_reduction <add>, %39, %cst_16 [1, 2] : vector<1x8x128xf32> to vector<1xf32>
    %41 = vector.shape_cast %40 : vector<1xf32> to vector<1x1x1xf32>
    %42 = vector.extract %41[0, 0, 0] : f32 from vector<1x1x1xf32>
    %43 = vector.broadcast %42 : f32 to vector<1x1xf32>
    %c0_17 = arith.constant 0 : index
    %c0_18 = arith.constant 0 : index
    %44 = vector.load %arg7[%c0_17, %c0_18] : memref<1x1xf32, #tpu.memory_space<vmem>>, vector<1x1xf32>
    tpu.vector_store %arg7[%c0_17, %c0_18], %43 {strides = array<i32>} : memref<1x1xf32, #tpu.memory_space<vmem>>, vector<1x1xf32>,
    return
  }
  func.func @transform_0(%arg0: i32) -> (i32, i32) {
    %c0_i32 = arith.constant 0 : i32
    %c0_i32_0 = arith.constant 0 : i32
    return %arg0, %c0_i32 : i32, i32
  }
  func.func @transform_1(%arg0: i32) -> (i32, i32) {
    %c0_i32 = arith.constant 0 : i32
    %c0_i32_0 = arith.constant 0 : i32
    return %arg0, %c0_i32 : i32, i32
  }
  func.func @transform_2(%arg0: i32) -> (i32, i32) {
    %c0_i32 = arith.constant 0 : i32
    %c0_i32_0 = arith.constant 0 : i32
    return %arg0, %c0_i32 : i32, i32
  }
  func.func @transform_3(%arg0: i32) -> (i32, i32) {
    %c0_i32 = arith.constant 0 : i32
    %c0_i32_0 = arith.constant 0 : i32
    %c0_i32_1 = arith.constant 0 : i32
    return %c0_i32, %c0_i32_0 : i32, i32
  }
  func.func @transform_4(%arg0: i32) -> (i32, i32) {
    %c0_i32 = arith.constant 0 : i32
    %c0_i32_0 = arith.constant 0 : i32
    %c0_i32_1 = arith.constant 0 : i32
    return %c0_i32, %c0_i32_0 : i32, i32
  }
  func.func @transform_5(%arg0: i32) -> (i32, i32) {
    %c0_i32 = arith.constant 0 : i32
    %c0_i32_0 = arith.constant 0 : i32
    return %arg0, %c0_i32 : i32, i32
  }
  func.func @transform_6(%arg0: i32) -> (i32, i32) {
    %c0_i32 = arith.constant 0 : i32
    %c0_i32_0 = arith.constant 0 : i32
    return %arg0, %c0_i32 : i32, i32
  }
}

</mosaic_0001>

<llo_original>
// kernel: transformer_approx_head.1
$region0: #{transformer_approx_head.1}
  #allocation0 [shape = 'u32[]', space=smem, size = 0x4, offset = 0x4, fixed_abs, tag = 'smem constant byte address 0x4 - core index']
  #allocation1 [shape = 'u32[144,128]{1,0:T(1,128)}', space=vmem, size = 0x12000, scoped, tag = 'internal scratch']
  %s0 = inlined_call_operand.vmem [shape: f32[8,128], index: 0, kind: input, shape index: {}]
  %s1 = inlined_call_operand.vmem [shape: f32[8,128], index: 1, kind: input, shape index: {}]
  %s2 = inlined_call_operand.vmem [shape: bf16[8,768], index: 2, kind: input, shape index: {}]
  %s3 = inlined_call_operand.vmem [shape: bf16[768,128], index: 3, kind: input, shape index: {}]
  %s4 = inlined_call_operand.vmem [shape: f32[1,128], index: 4, kind: input, shape index: {}]
  %s5 = inlined_call_operand.vmem [shape: f32[8,128], index: 5, kind: output, shape index: {0}]
  %s6 = inlined_call_operand.hbm [shape: f32[1,1], index: 6, kind: output, shape index: {1}]
  %7 = xla_tuple %s5, %s6
  %s8 = sld [smem:[#allocation0]]
  $region38: #{transformer_approx_head.1} parent=0
    _
  %s10 = ssub.s32 1, %s8
  %s11 = scalar_select 0, %s10, %s8
  $region1: #{transformer_approx_head.1} parent=0
    #allocation2 [shape = 'u8[512]{0}', space=vmem, size = 0x400, scoped, tag = 'output window, operand 1, single buffered']
    #allocation3 [shape = 's32[1]{0}', space=sflag, size = 0x4, scoped, tag = 'scoped memory for transformer_approx_head.1']
    %12 = vsyncpa [#allocation3], 0
    // Predicated region
    $region2: #{transformer_approx_head.1} parent=1 // pred_check
      _
    $region3: #{transformer_approx_head.1} parent=1 // pred_check_branch
      %14 = sbr.rel (0) target = $region5
    $region4: #{transformer_approx_head.1} parent=1 // pred_region
      _
    $region5: #{transformer_approx_head.1} parent=1 // pred_fallthru
      _
    // Predicated region
    $region6: #{transformer_approx_head.1} parent=1 // pred_check
      _
    $region7: #{transformer_approx_head.1} parent=1 // pred_check_branch
      %16 = sbr.rel (0) target = $region9
    $region8: #{transformer_approx_head.1} parent=1 // pred_region
      _
    $region9: #{transformer_approx_head.1} parent=1 // pred_fallthru
      _
    // Predicated region
    $region10: #{transformer_approx_head.1} parent=1 // pred_check
      _
    $region11: #{transformer_approx_head.1} parent=1 // pred_check_branch
      %18 = sbr.rel (0) target = $region13
    $region12: #{transformer_approx_head.1} parent=1 // pred_region
      _
    $region13: #{transformer_approx_head.1} parent=1 // pred_fallthru
      _
    // Predicated region
    $region14: #{transformer_approx_head.1} parent=1 // pred_check
      _
    $region15: #{transformer_approx_head.1} parent=1 // pred_check_branch
      %20 = sbr.rel (0) target = $region17
    $region16: #{transformer_approx_head.1} parent=1 // pred_region
      _
    $region17: #{transformer_approx_head.1} parent=1 // pred_fallthru
      _
    // Predicated region
    $region18: #{transformer_approx_head.1} parent=1 // pred_check
      _
    $region19: #{transformer_approx_head.1} parent=1 // pred_check_branch
      %22 = sbr.rel (0) target = $region21
    $region20: #{transformer_approx_head.1} parent=1 // pred_region
      _
    $region21: #{transformer_approx_head.1} parent=1 // pred_fallthru
      _
    %v24 = vld [vmem:[%s1] sm:$0xff]
    %25 = vmax.xlane.f32.xlu0 %v24
    %v26 = vpop.xlane.xlu0 %25
    %v27 = vsub.f32 %v24, %v26
    %v28 = vmul.f32 %v27, 1.442695
    %v29 = vpow.pop %v28
    %30 = vadd.xlane.f32.xlu0 %v29
    %v31 = vpop.xlane.xlu0 %30
    %v32 = vlog2.pop %v31
    %v33 = vmul.f32 %v32, 0.6931472
    %v34 = vadd.f32 %v26, %v33
    %v35 = vsub.f32 %v24, %v34
    %v36 = vld [vmem:[%s0] sm:$0xff]
    %37 = vmax.xlane.f32.xlu0 %v36
    %v38 = vpop.xlane.xlu0 %37
    %v39 = vsub.f32 %v36, %v38
    %v40 = vmul.f32 %v39, 1.442695
    %v41 = vpow.pop %v40
    %42 = vadd.xlane.f32.xlu0 %v41
    %v43 = vpop.xlane.xlu0 %42
    %v44 = vlog2.pop %v43
    %v45 = vmul.f32 %v44, 0.6931472
    %v46 = vadd.f32 %v38, %v45
    %v47 = vsub.f32 %v36, %v46
    %v48 = vsub.f32 %v35, %v47
    %v49 = vld [vmem:[%s2] sm:$0xff]
    %v50 = vld [vmem:[%s2 + $0x8] sm:$0xff]
    %v51 = vld [vmem:[%s2 + $0x10] sm:$0xff]
    %v52 = vld [vmem:[%s3] sm:$0xf]
    %v53 = vld [vmem:[%s3 + $0x4] sm:$0xf]
    %v54 = vld [vmem:[%s3 + $0x8] sm:$0xf]
    %v55 = vld [vmem:[%s3 + $0xc] sm:$0xf]
    %v56 = vld [vmem:[%s3 + $0x10] sm:$0xf]
    %v57 = vld [vmem:[%s3 + $0x14] sm:$0xf]
    %v58 = vld [vmem:[%s3 + $0x18] sm:$0xf]
    %v59 = vld [vmem:[%s3 + $0x1c] sm:$0xf]
    %v60 = vld [vmem:[%s3 + $0x20] sm:$0xf]
    %v61 = vld [vmem:[%s3 + $0x24] sm:$0xf]
    %v62 = vld [vmem:[%s3 + $0x28] sm:$0xf]
    %v63 = vld [vmem:[%s3 + $0x2c] sm:$0xf]
    %v64 = vld [vmem:[%s3 + $0x30] sm:$0xf]
    %v65 = vld [vmem:[%s3 + $0x34] sm:$0xf]
    %v66 = vld [vmem:[%s3 + $0x38] sm:$0xf]
    %v67 = vld [vmem:[%s3 + $0x3c] sm:$0xf]
    %v68 = vld [vmem:[%s3 + $0x40] sm:$0xf]
    %v69 = vld [vmem:[%s3 + $0x44] sm:$0xf]
    %v70 = vld [vmem:[%s3 + $0x48] sm:$0xf]
    %v71 = vld [vmem:[%s3 + $0x4c] sm:$0xf]
    %v72 = vld [vmem:[%s3 + $0x50] sm:$0xf]
    %v73 = vld [vmem:[%s3 + $0x54] sm:$0xf]
    %v74 = vld [vmem:[%s3 + $0x58] sm:$0xf]
    %v75 = vld [vmem:[%s3 + $0x5c] sm:$0xf]
    %v76 = vld [vmem:[%s3 + $0x60] sm:$0xf]
    %v77 = vld [vmem:[%s3 + $0x64] sm:$0xf]
    %v78 = vld [vmem:[%s3 + $0x68] sm:$0xf]
    %v79 = vld [vmem:[%s3 + $0x6c] sm:$0xf]
    %v80 = vld [vmem:[%s3 + $0x70] sm:$0xf]
    %v81 = vld [vmem:[%s3 + $0x74] sm:$0xf]
    %v82 = vld [vmem:[%s3 + $0x78] sm:$0xf]
    %v83 = vld [vmem:[%s3 + $0x7c] sm:$0xf]
    %v84 = vld [vmem:[%s3 + $0x80] sm:$0xf]
    %v85 = vld [vmem:[%s3 + $0x84] sm:$0xf]
    %v86 = vld [vmem:[%s3 + $0x88] sm:$0xf]
    %v87 = vld [vmem:[%s3 + $0x8c] sm:$0xf]
    %v88 = vld [vmem:[%s3 + $0x90] sm:$0xf]
    %v89 = vld [vmem:[%s3 + $0x94] sm:$0xf]
    %v90 = vld [vmem:[%s3 + $0x98] sm:$0xf]
    %v91 = vld [vmem:[%s3 + $0x9c] sm:$0xf]
    %v92 = vld [vmem:[%s3 + $0xa0] sm:$0xf]
    %v93 = vld [vmem:[%s3 + $0xa4] sm:$0xf]
    %v94 = vld [vmem:[%s3 + $0xa8] sm:$0xf]
    %v95 = vld [vmem:[%s3 + $0xac] sm:$0xf]
    %v96 = vld [vmem:[%s3 + $0xb0] sm:$0xf]
    %v97 = vld [vmem:[%s3 + $0xb4] sm:$0xf]
    %v98 = vld [vmem:[%s3 + $0xb8] sm:$0xf]
    %v99 = vld [vmem:[%s3 + $0xbc] sm:$0xf]
    %v100 = vld [vmem:[%s3 + $0xc0] sm:$0xf]
    %v101 = vld [vmem:[%s3 + $0xc4] sm:$0xf]
    %v102 = vld [vmem:[%s3 + $0xc8] sm:$0xf]
    %v103 = vld [vmem:[%s3 + $0xcc] sm:$0xf]
    %v104 = vld [vmem:[%s3 + $0xd0] sm:$0xf]
    %v105 = vld [vmem:[%s3 + $0xd4] sm:$0xf]
    %v106 = vld [vmem:[%s3 + $0xd8] sm:$0xf]
    %v107 = vld [vmem:[%s3 + $0xdc] sm:$0xf]
    %v108 = vld [vmem:[%s3 + $0xe0] sm:$0xf]
    %v109 = vld [vmem:[%s3 + $0xe4] sm:$0xf]
    %v110 = vld [vmem:[%s3 + $0xe8] sm:$0xf]
    %v111 = vld [vmem:[%s3 + $0xec] sm:$0xf]
    %v112 = vld [vmem:[%s3 + $0xf0] sm:$0xf]
    %v113 = vld [vmem:[%s3 + $0xf4] sm:$0xf]
    %v114 = vld [vmem:[%s3 + $0xf8] sm:$0xf]
    %v115 = vld [vmem:[%s3 + $0xfc] sm:$0xf]
    %v116 = vld [vmem:[%s3 + $0x100] sm:$0xf]
    %v117 = vld [vmem:[%s3 + $0x104] sm:$0xf]
    %v118 = vld [vmem:[%s3 + $0x108] sm:$0xf]
    %v119 = vld [vmem:[%s3 + $0x10c] sm:$0xf]
    %v120 = vld [vmem:[%s3 + $0x110] sm:$0xf]
    %v121 = vld [vmem:[%s3 + $0x114] sm:$0xf]
    %v122 = vld [vmem:[%s3 + $0x118] sm:$0xf]
    %v123 = vld [vmem:[%s3 + $0x11c] sm:$0xf]
    %v124 = vld [vmem:[%s3 + $0x120] sm:$0xf]
    %v125 = vld [vmem:[%s3 + $0x124] sm:$0xf]
    %v126 = vld [vmem:[%s3 + $0x128] sm:$0xf]
    %v127 = vld [vmem:[%s3 + $0x12c] sm:$0xf]
    %v128 = vld [vmem:[%s3 + $0x130] sm:$0xf]
    %v129 = vld [vmem:[%s3 + $0x134] sm:$0xf]
    %v130 = vld [vmem:[%s3 + $0x138] sm:$0xf]
    %v131 = vld [vmem:[%s3 + $0x13c] sm:$0xf]
    %v132 = vld [vmem:[%s3 + $0x140] sm:$0xf]
    %v133 = vld [vmem:[%s3 + $0x144] sm:$0xf]
    %v134 = vld [vmem:[%s3 + $0x148] sm:$0xf]
    %v135 = vld [vmem:[%s3 + $0x14c] sm:$0xf]
    %v136 = vld [vmem:[%s3 + $0x150] sm:$0xf]
    %v137 = vld [vmem:[%s3 + $0x154] sm:$0xf]
    %v138 = vld [vmem:[%s3 + $0x158] sm:$0xf]
    %v139 = vld [vmem:[%s3 + $0x15c] sm:$0xf]
    %v140 = vld [vmem:[%s3 + $0x160] sm:$0xf]
    %v141 = vld [vmem:[%s3 + $0x164] sm:$0xf]
    %v142 = vld [vmem:[%s3 + $0x168] sm:$0xf]
    %v143 = vld [vmem:[%s3 + $0x16c] sm:$0xf]
    %v144 = vld [vmem:[%s3 + $0x170] sm:$0xf]
    %v145 = vld [vmem:[%s3 + $0x174] sm:$0xf]
    %v146 = vld [vmem:[%s3 + $0x178] sm:$0xf]
    %v147 = vld [vmem:[%s3 + $0x17c] sm:$0xf]
    %v148 = vld [vmem:[%s4] sm:$0x1]
    %v150 = vlaneseq
    %v151 = vshrl.u32 %v150, 7
    %v152 = vsub.s32 0, %v151
    %v153 = vrot.slane %v148, %v152
    %v158 = vunpack.c.l.b16 %v49
    %v159 = vunpack.c.h.b16 %v49
    %v160 = vunpack.c.l.b16 %v50
    %v161 = vunpack.c.h.b16 %v50
    %v162 = vunpack.c.l.b16 %v51
    %v163 = vunpack.c.h.b16 %v51
    %v164 = vpack.c.b16 %v158, %v158
    %v165 = vpack.c.b16 %v159, %v159
    %v166 = vpack.c.b16 %v160, %v160
    %v167 = vpack.c.b16 %v161, %v161
    %v168 = vpack.c.b16 %v162, %v162
    %v169 = vpack.c.b16 %v163, %v163
    %v272 = vunpack.c.l.b16 %v52
    %v273 = vunpack.c.l.b16 %v53
    %v274 = vunpack.c.l.b16 %v54
    %v275 = vunpack.c.l.b16 %v55
    %v276 = vunpack.c.l.b16 %v56
    %v277 = vunpack.c.l.b16 %v57
    %v278 = vunpack.c.l.b16 %v58
    %v279 = vunpack.c.l.b16 %v59
    %v280 = vunpack.c.l.b16 %v60
    %v281 = vunpack.c.l.b16 %v61
    %v282 = vunpack.c.l.b16 %v62
    %v283 = vunpack.c.l.b16 %v63
    %v284 = vunpack.c.l.b16 %v64
    %v285 = vunpack.c.l.b16 %v65
    %v286 = vunpack.c.l.b16 %v66
    %v287 = vunpack.c.l.b16 %v67
    %v288 = vunpack.c.l.b16 %v68
    %v289 = vunpack.c.l.b16 %v69
    %v290 = vunpack.c.l.b16 %v70
    %v291 = vunpack.c.l.b16 %v71
    %v292 = vunpack.c.l.b16 %v72
    %v293 = vunpack.c.l.b16 %v73
    %v294 = vunpack.c.l.b16 %v74
    %v295 = vunpack.c.l.b16 %v75
    %v296 = vunpack.c.l.b16 %v76
    %v297 = vunpack.c.l.b16 %v77
    %v298 = vunpack.c.l.b16 %v78
    %v299 = vunpack.c.l.b16 %v79
    %v300 = vunpack.c.l.b16 %v80
    %v301 = vunpack.c.l.b16 %v81
    %v302 = vunpack.c.l.b16 %v82
    %v303 = vunpack.c.l.b16 %v83
    %v304 = vunpack.c.l.b16 %v84
    %v305 = vunpack.c.l.b16 %v85
    %v306 = vunpack.c.l.b16 %v86
    %v307 = vunpack.c.l.b16 %v87
    %v308 = vunpack.c.l.b16 %v88
    %v309 = vunpack.c.l.b16 %v89
    %v310 = vunpack.c.l.b16 %v90
    %v311 = vunpack.c.l.b16 %v91
    %v312 = vunpack.c.l.b16 %v92
    %v313 = vunpack.c.l.b16 %v93
    %v314 = vunpack.c.l.b16 %v94
    %v315 = vunpack.c.l.b16 %v95
    %v316 = vunpack.c.l.b16 %v96
    %v317 = vunpack.c.l.b16 %v97
    %v318 = vunpack.c.l.b16 %v98
    %v319 = vunpack.c.l.b16 %v99
    %v320 = vunpack.c.l.b16 %v100
    %v321 = vunpack.c.l.b16 %v101
    %v322 = vunpack.c.l.b16 %v102
    %v323 = vunpack.c.l.b16 %v103
    %v324 = vunpack.c.l.b16 %v104
    %v325 = vunpack.c.l.b16 %v105
    %v326 = vunpack.c.l.b16 %v106
    %v327 = vunpack.c.l.b16 %v107
    %v328 = vunpack.c.l.b16 %v108
    %v329 = vunpack.c.l.b16 %v109
    %v330 = vunpack.c.l.b16 %v110
    %v331 = vunpack.c.l.b16 %v111
    %v332 = vunpack.c.l.b16 %v112
    %v333 = vunpack.c.l.b16 %v113
    %v334 = vunpack.c.l.b16 %v114
    %v335 = vunpack.c.l.b16 %v115
    %v336 = vunpack.c.l.b16 %v116
    %v337 = vunpack.c.l.b16 %v117
    %v338 = vunpack.c.l.b16 %v118
    %v339 = vunpack.c.l.b16 %v119
    %v340 = vunpack.c.l.b16 %v120
    %v341 = vunpack.c.l.b16 %v121
    %v342 = vunpack.c.l.b16 %v122
    %v343 = vunpack.c.l.b16 %v123
    %v344 = vunpack.c.l.b16 %v124
    %v345 = vunpack.c.l.b16 %v125
    %v346 = vunpack.c.l.b16 %v126
    %v347 = vunpack.c.l.b16 %v127
    %v348 = vunpack.c.l.b16 %v128
    %v349 = vunpack.c.l.b16 %v129
    %v350 = vunpack.c.l.b16 %v130
    %v351 = vunpack.c.l.b16 %v131
    %v352 = vunpack.c.l.b16 %v132
    %v353 = vunpack.c.l.b16 %v133
    %v354 = vunpack.c.l.b16 %v134
    %v355 = vunpack.c.l.b16 %v135
    %v356 = vunpack.c.l.b16 %v136
    %v357 = vunpack.c.l.b16 %v137
    %v358 = vunpack.c.l.b16 %v138
    %v359 = vunpack.c.l.b16 %v139
    %v360 = vunpack.c.l.b16 %v140
    %v361 = vunpack.c.l.b16 %v141
    %v362 = vunpack.c.l.b16 %v142
    %v363 = vunpack.c.l.b16 %v143
    %v364 = vunpack.c.l.b16 %v144
    %v365 = vunpack.c.l.b16 %v145
    %v366 = vunpack.c.l.b16 %v146
    %v367 = vunpack.c.l.b16 %v147
    %v368 = vpack.c.b16 %v273, %v272
    %v369 = vpack.c.b16 %v275, %v274
    %v370 = vpack.c.b16 %v277, %v276
    %v371 = vpack.c.b16 %v279, %v278
    %v372 = vpack.c.b16 %v281, %v280
    %v373 = vpack.c.b16 %v283, %v282
    %v374 = vpack.c.b16 %v285, %v284
    %v375 = vpack.c.b16 %v287, %v286
    %v376 = vpack.c.b16 %v289, %v288
    %v377 = vpack.c.b16 %v291, %v290
    %v378 = vpack.c.b16 %v293, %v292
    %v379 = vpack.c.b16 %v295, %v294
    %v380 = vpack.c.b16 %v297, %v296
    %v381 = vpack.c.b16 %v299, %v298
    %v382 = vpack.c.b16 %v301, %v300
    %v383 = vpack.c.b16 %v303, %v302
    %v384 = vpack.c.b16 %v305, %v304
    %v385 = vpack.c.b16 %v307, %v306
    %v386 = vpack.c.b16 %v309, %v308
    %v387 = vpack.c.b16 %v311, %v310
    %v388 = vpack.c.b16 %v313, %v312
    %v389 = vpack.c.b16 %v315, %v314
    %v390 = vpack.c.b16 %v317, %v316
    %v391 = vpack.c.b16 %v319, %v318
    %v392 = vpack.c.b16 %v321, %v320
    %v393 = vpack.c.b16 %v323, %v322
    %v394 = vpack.c.b16 %v325, %v324
    %v395 = vpack.c.b16 %v327, %v326
    %v396 = vpack.c.b16 %v329, %v328
    %v397 = vpack.c.b16 %v331, %v330
    %v398 = vpack.c.b16 %v333, %v332
    %v399 = vpack.c.b16 %v335, %v334
    %v400 = vpack.c.b16 %v337, %v336
    %v401 = vpack.c.b16 %v339, %v338
    %v402 = vpack.c.b16 %v341, %v340
    %v403 = vpack.c.b16 %v343, %v342
    %v404 = vpack.c.b16 %v345, %v344
    %v405 = vpack.c.b16 %v347, %v346
    %v406 = vpack.c.b16 %v349, %v348
    %v407 = vpack.c.b16 %v351, %v350
    %v408 = vpack.c.b16 %v353, %v352
    %v409 = vpack.c.b16 %v355, %v354
    %v410 = vpack.c.b16 %v357, %v356
    %v411 = vpack.c.b16 %v359, %v358
    %v412 = vpack.c.b16 %v361, %v360
    %v413 = vpack.c.b16 %v363, %v362
    %v414 = vpack.c.b16 %v365, %v364
    %v415 = vpack.c.b16 %v367, %v366
    %464 = vmatprep.subr.bf16.mxu0 0
    %465 = vmatpush1.bf16.msra.mxu0 %v368
    %466 = vmatprep.subr.bf16.mxu0 0
    %467 = vmatpush1.bf16.msra.mxu0 %v369
    %468 = vmatprep.subr.bf16.mxu0 0
    %469 = vmatpush1.bf16.msra.mxu0 %v370
    %470 = vmatprep.subr.bf16.mxu0 0
    %471 = vmatpush1.bf16.msra.mxu0 %v371
    %472 = vmatprep.subr.bf16.mxu0 0
    %473 = vmatpush1.bf16.msra.mxu0 %v372
    %474 = vmatprep.subr.bf16.mxu0 0
    %475 = vmatpush1.bf16.msra.mxu0 %v373
    %476 = vmatprep.subr.bf16.mxu0 0
    %477 = vmatpush1.bf16.msra.mxu0 %v374
    %478 = vmatprep.subr.bf16.mxu0 0
    %479 = vmatpush1.bf16.msra.mxu0 %v375
    %480 = vmatprep.subr.bf16.mxu0 0
    %481 = vmatpush1.bf16.msra.mxu0 %v376
    %482 = vmatprep.subr.bf16.mxu0 0
    %483 = vmatpush1.bf16.msra.mxu0 %v377
    %484 = vmatprep.subr.bf16.mxu0 0
    %485 = vmatpush1.bf16.msra.mxu0 %v378
    %486 = vmatprep.subr.bf16.mxu0 0
    %487 = vmatpush1.bf16.msra.mxu0 %v379
    %488 = vmatprep.subr.bf16.mxu0 0
    %489 = vmatpush1.bf16.msra.mxu0 %v380
    %490 = vmatprep.subr.bf16.mxu0 0
    %491 = vmatpush1.bf16.msra.mxu0 %v381
    %492 = vmatprep.subr.bf16.mxu0 0
    %493 = vmatpush1.bf16.msra.mxu0 %v382
    %494 = vmatprep.subr.bf16.mxu0 0
    %495 = vmatpush1.bf16.msra.mxu0 %v383
    %496 = vmatprep.mubr.bf16.mxu0 %v165
    %497 = vmatmul.mubr.bf16.gmra.mrb[0].mxu0 %v164
    %v498 = vpop.f32.mrb[0].mxu0
    %v499 = vadd.f32 %v153, %v498
    %v500 = vpop.f32.mrb[0].mxu0
    %v501 = vpop.f32.mrb[0].mxu0
    %v502 = vpop.f32.mrb[0].mxu0
    %503 = vdwg.mxu0
    %504 = vmatprep.subr.bf16.mxu0 0
    %505 = vmatpush1.bf16.msra.mxu0 %v384
    %506 = vmatprep.subr.bf16.mxu0 0
    %507 = vmatpush1.bf16.msra.mxu0 %v385
    %508 = vmatprep.subr.bf16.mxu0 0
    %509 = vmatpush1.bf16.msra.mxu0 %v386
    %510 = vmatprep.subr.bf16.mxu0 0
    %511 = vmatpush1.bf16.msra.mxu0 %v387
    %512 = vmatprep.subr.bf16.mxu0 0
    %513 = vmatpush1.bf16.msra.mxu0 %v388
    %514 = vmatprep.subr.bf16.mxu0 0
    %515 = vmatpush1.bf16.msra.mxu0 %v389
    %516 = vmatprep.subr.bf16.mxu0 0
    %517 = vmatpush1.bf16.msra.mxu0 %v390
    %518 = vmatprep.subr.bf16.mxu0 0
    %519 = vmatpush1.bf16.msra.mxu0 %v391
    %520 = vmatprep.subr.bf16.mxu0 0
    %521 = vmatpush1.bf16.msra.mxu0 %v392
    %522 = vmatprep.subr.bf16.mxu0 0
    %523 = vmatpush1.bf16.msra.mxu0 %v393
    %524 = vmatprep.subr.bf16.mxu0 0
    %525 = vmatpush1.bf16.msra.mxu0 %v394
    %526 = vmatprep.subr.bf16.mxu0 0
    %527 = vmatpush1.bf16.msra.mxu0 %v395
    %528 = vmatprep.subr.bf16.mxu0 0
    %529 = vmatpush1.bf16.msra.mxu0 %v396
    %530 = vmatprep.subr.bf16.mxu0 0
    %531 = vmatpush1.bf16.msra.mxu0 %v397
    %532 = vmatprep.subr.bf16.mxu0 0
    %533 = vmatpush1.bf16.msra.mxu0 %v398
    %534 = vmatprep.subr.bf16.mxu0 0
    %535 = vmatpush1.bf16.msra.mxu0 %v399
    %536 = vmatprep.mubr.bf16.mxu0 %v167
    %537 = vmatmul.mubr.bf16.gmra.mrb[0].mxu0 %v166
    %v538 = vpop.f32.mrb[0].mxu0
    %v539 = vadd.f32 %v499, %v538
    %v540 = vpop.f32.mrb[0].mxu0
    %v541 = vpop.f32.mrb[0].mxu0
    %v542 = vpop.f32.mrb[0].mxu0
    %543 = vdwg.mxu0
    %544 = vmatprep.subr.bf16.mxu0 0
    %545 = vmatpush1.bf16.msra.mxu0 %v400
    %546 = vmatprep.subr.bf16.mxu0 0
    %547 = vmatpush1.bf16.msra.mxu0 %v401
    %548 = vmatprep.subr.bf16.mxu0 0
    %549 = vmatpush1.bf16.msra.mxu0 %v402
    %550 = vmatprep.subr.bf16.mxu0 0
    %551 = vmatpush1.bf16.msra.mxu0 %v403
    %552 = vmatprep.subr.bf16.mxu0 0
    %553 = vmatpush1.bf16.msra.mxu0 %v404
    %554 = vmatprep.subr.bf16.mxu0 0
    %555 = vmatpush1.bf16.msra.mxu0 %v405
    %556 = vmatprep.subr.bf16.mxu0 0
    %557 = vmatpush1.bf16.msra.mxu0 %v406
    %558 = vmatprep.subr.bf16.mxu0 0
    %559 = vmatpush1.bf16.msra.mxu0 %v407
    %560 = vmatprep.subr.bf16.mxu0 0
    %561 = vmatpush1.bf16.msra.mxu0 %v408
    %562 = vmatprep.subr.bf16.mxu0 0
    %563 = vmatpush1.bf16.msra.mxu0 %v409
    %564 = vmatprep.subr.bf16.mxu0 0
    %565 = vmatpush1.bf16.msra.mxu0 %v410
    %566 = vmatprep.subr.bf16.mxu0 0
    %567 = vmatpush1.bf16.msra.mxu0 %v411
    %568 = vmatprep.subr.bf16.mxu0 0
    %569 = vmatpush1.bf16.msra.mxu0 %v412
    %570 = vmatprep.subr.bf16.mxu0 0
    %571 = vmatpush1.bf16.msra.mxu0 %v413
    %572 = vmatprep.subr.bf16.mxu0 0
    %573 = vmatpush1.bf16.msra.mxu0 %v414
    %574 = vmatprep.subr.bf16.mxu0 0
    %575 = vmatpush1.bf16.msra.mxu0 %v415
    %576 = vmatprep.mubr.bf16.mxu0 %v169
    %577 = vmatmul.mubr.bf16.gmra.mrb[0].mxu0 %v168
    %v578 = vpop.f32.mrb[0].mxu0
    %v579 = vadd.f32 %v539, %v578
    %v580 = vpop.f32.mrb[0].mxu0
    %v581 = vpop.f32.mrb[0].mxu0
    %v582 = vpop.f32.mrb[0].mxu0
    %583 = vdwg.mxu0
    %584 = vst [vmem:[%s5] sm:$0xff] %v579
    %v585 = vlaneseq
    %v586 = vand.u32 %v585, 127
    %v587 = vsub.f32 %v48, %v579
    %vm588 = vcmp.lt.s32.totalorder %v586, 4
    %v589 = vmul.f32 %v587, %v587
    %v590 = vsel %vm588, %v589, 0.0
    %591 = vadd.xlane.f32.xlu0 %v590
    %v592 = vpop.xlane.xlu0 %591
    %v593 = vrot.slane %v592, 4
    %v594 = vadd.f32 %v592, %v593
    %v595 = vrot.slane %v594, 2
    %v596 = vadd.f32 %v594, %v595
    %v597 = vrot.slane %v596, 1
    %v598 = vadd.f32 %v596, %v597
    %s599 = vtos %v598
    %v600 = vstv %s599
    %vm601 = vcmask 0
    %602 = vst.msk [vmem:[#allocation2] sm:$0x1] %vm601, %v600
    // Predicated region
    $region22: #{transformer_approx_head.1} parent=1 // pred_check
      _
    $region23: #{transformer_approx_head.1} parent=1 // pred_check_branch
      %604 = sbr.rel (0) target = $region25
    $region24: #{transformer_approx_head.1} parent=1 // pred_region
      _
    $region25: #{transformer_approx_head.1} parent=1 // pred_fallthru
      _
    // Predicated region
    $region26: #{transformer_approx_head.1} parent=1 // pred_check
      _
    $region27: #{transformer_approx_head.1} parent=1 // pred_check_branch
      %606 = sbr.rel (0) target = $region29
    $region28: #{transformer_approx_head.1} parent=1 // pred_region
      %s608 = ssub.s32 16, 16
      %609 = vsyncadd [#allocation3], %s608
      %s611 = sshll.u32 [#allocation2], 4
      %s612 = int_to_ptr.vmem [resolvable:$true] %s611
      %614 = dma.vmem_to_hbm [thread:$0]  %s612, 16, %s6, [#allocation3]
    $region29: #{transformer_approx_head.1} parent=1 // pred_fallthru
      _
    // Predicated region
    $region30: #{transformer_approx_head.1} parent=1 // pred_check
      _
    $region31: #{transformer_approx_head.1} parent=1 // pred_check_branch
      %616 = sbr.rel (0) target = $region33
    $region32: #{transformer_approx_head.1} parent=1 // pred_region
      _
    $region33: #{transformer_approx_head.1} parent=1 // pred_fallthru
      _
    // Predicated region
    $region34: #{transformer_approx_head.1} parent=1 // pred_check
      _
    $region35: #{transformer_approx_head.1} parent=1 // pred_check_branch
      %618 = sbr.rel (0) target = $region37
    $region36: #{transformer_approx_head.1} parent=1 // pred_region
      %619 = dma.done [#allocation3], 16
    $region37: #{transformer_approx_head.1} parent=1 // pred_fallthru
      _
    %620 = vsyncpa [#allocation3], 1

</llo_original>
